<compile_context>
chip_gen: v5e
topology: v5e:2x2
jax: 0.10.0
libtpu: 0.0.40
codegen_flags: <defaults>
</compile_context>

<pallas_src>
import math
import functools

import numpy as np
import jax
import jax.numpy as jnp
from jax.experimental import pallas as pl
from jax.experimental.pallas import tpu as pltpu


def _pe_kernel(freq_ref, bias_ref, o_ref, *, fold: int, tile_rows: int):
    """Writes one (tile_rows, width) lane-dense slab of the folded PE table.

    Folded layout: row r, column c = p*dim + j   <->   pe[r*fold + p, j].
      angle = (r*fold) * inv_freq[j] + (p * inv_freq[j] + phase[j])
            = pos_base * freq_ref + bias_ref
    with phase = 0 on even j and pi/2 on odd j (cos(x) = sin(x + pi/2)),
    so there is exactly one EUP transcendental per element.
    """
    row0 = pl.program_id(0) * tile_rows
    # Single sublane iota; positions stay exact integers until one convert.
    r = jax.lax.broadcasted_iota(jnp.int32, (tile_rows, 1), 0) + row0
    pos_base = (r * fold).astype(jnp.float32)                 # (tile_rows, 1)
    angle = pos_base * freq_ref[...] + bias_ref[...]          # (tile_rows, width)
    o_ref[...] = jnp.sin(angle)


def _choose_fold(dim: int, max_len: int) -> int:
    """How many consecutive positions to pack onto the lane axis."""
    if dim % 128 == 0:
        return 1
    fold = 128 // math.gcd(dim, 128)
    if max_len % fold == 0:
        return fold
    return 1  # fall back to a single full-array block


def _choose_tile_rows(rows: int, width: int, target_block_bytes: int) -> int:
    """Largest divisor of `rows` that is a multiple of 8 and fits the target."""
    if rows * width * 4 <= target_block_bytes:
        return rows
    cap = max(8, target_block_bytes // (width * 4))
    best = None
    for d in range(8, int(cap) + 1, 8):
        if rows % d == 0:
            best = d
    return best if best is not None else rows


def build_positional_embedding(dim: int, max_len: int, base: float = 500000.0,
                               target_block_bytes: int = 4 * 1024 * 1024) -> jnp.ndarray:
    """Computes the (1, max_len, dim) sinusoidal table with a Pallas kernel."""
    assert dim % 2 == 0, "dim must be even (matches the PyTorch module)"

    fold = _choose_fold(dim, max_len)
    width = dim * fold                 # lane width of the folded output
    rows = max_len // fold             # sublane rows of the folded output

    lane_dense = (width % 128 == 0)
    if lane_dense:
        tile_rows = _choose_tile_rows(rows, width, target_block_bytes)
    else:
        # Non-128 lane width is only legal as a full-array block.
        tile_rows = rows
    if rows % tile_rows != 0:
        tile_rows = rows
    grid = (rows // tile_rows,)

    # Hoisted per-column constants (depend only on dim/base/fold): no in-kernel
    # exp, modulo or second iota.
    j = np.arange(dim)
    inv_freq = np.exp(-math.log(base) * (j - (j % 2)).astype(np.float64) / dim)
    phase = np.where(j % 2 == 0, 0.0, math.pi / 2.0)
    p = np.repeat(np.arange(fold, dtype=np.float64), dim)      # folded position offset
    freq_f = np.tile(inv_freq, fold)                            # (width,)
    bias_f = p * freq_f + np.tile(phase, fold)                  # (width,)

    freq = jnp.asarray(freq_f, dtype=jnp.float32)[None, :]      # (1, width)
    bias = jnp.asarray(bias_f, dtype=jnp.float32)[None, :]      # (1, width)

    kernel = functools.partial(_pe_kernel, fold=fold, tile_rows=tile_rows)

    pe_folded = pl.pallas_call(
        kernel,
        out_shape=jax.ShapeDtypeStruct((rows, width), jnp.float32),
        grid_spec=pltpu.PrefetchScalarGridSpec(
            num_scalar_prefetch=0,
            grid=grid,
            in_specs=[pl.BlockSpec((1, width), lambda i: (0, 0)),
                      pl.BlockSpec((1, width), lambda i: (0, 0))],
            out_specs=pl.BlockSpec((tile_rows, width), lambda i: (i, 0)),
        ),
        compiler_params=pltpu.CompilerParams(dimension_semantics=("parallel",)),
    )(freq, bias)

    # Row-major relabel of the folded layout back to (max_len, dim).
    pe = jnp.reshape(pe_folded, (max_len, dim))
    return pe[None, :, :]  # (1, max_len, dim)


def positional_embedding_forward(pe: jnp.ndarray, T: int) -> jnp.ndarray:
    """forward(T): return pe[:, :T] — shape (1, T, dim)."""
    return pe[:, :T]


def _reference_pe(dim: int, max_len: int, base: float = 500000.0) -> jnp.ndarray:
    # Pure-JAX reference mirroring the PyTorch __init__.
    position = jnp.arange(0, max_len, dtype=jnp.float32)[:, None]
    div_term = jnp.exp(-math.log(base) * jnp.arange(0, dim, 2, dtype=jnp.float32) / dim)
    pe = jnp.zeros((max_len, dim), dtype=jnp.float32)
    pe = pe.at[:, 0::2].set(jnp.sin(position * div_term))
    pe = pe.at[:, 1::2].set(jnp.cos(position * div_term))
    return pe[None, :, :]


if __name__ == "__main__":
    # The module's forward takes only an integer T; there is no tensor input.
    # PRNGKey(0) is used only to pick a deterministic T for the demo.
    key = jax.random.PRNGKey(0)
    dim = 32
    max_len_small = 256
    T = int(jax.random.randint(key, (), 4, 16))  # deterministic small sequence length

    pe = build_positional_embedding(dim, max_len_small)
    out = positional_embedding_forward(pe, T)
    out = jax.block_until_ready(out)

    ref = _reference_pe(dim, max_len_small)[:, :T]
    assert out.shape == (1, T, dim), out.shape
    assert out.dtype == jnp.float32
    # sin(x + pi/2) vs cos(x): identical up to f32 rounding of pi/2 (~4e-8).
    assert jnp.allclose(out, ref, atol=2e-5, rtol=1e-5)

    print("KERNEL_OK")
</pallas_src>

<mosaic_0001>
module attributes {stable_mosaic.version = 11 : i64} {
  func.func @_pe_kernel(%arg0: i32, %arg1: memref<1x128xf32, #tpu.memory_space<vmem>>, %arg2: memref<1x128xf32, #tpu.memory_space<vmem>>, %arg3: memref<64x128xf32, #tpu.memory_space<vmem>>) attributes {dimension_semantics = [#tpu.dimension_semantics<parallel>], iteration_bounds = array<i64: 1>, scalar_prefetch = 0 : i64, scratch_operands = 0 : i64, tpu.core_type = #tpu.core_type<tc>, window_params = [{pipeline_mode = #tpu.pipeline_mode<synchronous>, transform_indices = @transform_0, window_bounds = array<i64: 1, 128>}, {pipeline_mode = #tpu.pipeline_mode<synchronous>, transform_indices = @transform_1, window_bounds = array<i64: 1, 128>}, {transform_indices = @transform_2, window_bounds = array<i64: 64, 128>}]} {
    %c64_i32 = arith.constant 64 : i32
    %0 = arith.muli %arg0, %c64_i32 : i32
    %1 = tpu.iota {dimensions = array<i32: 0>} : vector<64x1xi32>
    %2 = vector.broadcast %0 : i32 to vector<64x1xi32>
    %3 = arith.addi %1, %2 : vector<64x1xi32>
    %c4_i32 = arith.constant 4 : i32
    %4 = vector.broadcast %c4_i32 : i32 to vector<64x1xi32>
    %5 = arith.muli %3, %4 : vector<64x1xi32>
    %6 = arith.sitofp %5 : vector<64x1xi32> to vector<64x1xf32>
    %c0 = arith.constant 0 : index
    %c0_0 = arith.constant 0 : index
    %7 = vector.load %arg1[%c0, %c0_0] : memref<1x128xf32, #tpu.memory_space<vmem>>, vector<1x128xf32>
    %8 = vector.broadcast %6 : vector<64x1xf32> to vector<64x128xf32>
    %9 = vector.broadcast %7 : vector<1x128xf32> to vector<64x128xf32>
    %10 = arith.mulf %8, %9 : vector<64x128xf32>
    %c0_1 = arith.constant 0 : index
    %c0_2 = arith.constant 0 : index
    %11 = vector.load %arg2[%c0_1, %c0_2] : memref<1x128xf32, #tpu.memory_space<vmem>>, vector<1x128xf32>
    %12 = vector.broadcast %11 : vector<1x128xf32> to vector<64x128xf32>
    %13 = arith.addf %10, %12 : vector<64x128xf32>
    %14 = math.sin %13 : vector<64x128xf32>
    %c0_3 = arith.constant 0 : index
    %c0_4 = arith.constant 0 : index
    %15 = vector.load %arg3[%c0_3, %c0_4] : memref<64x128xf32, #tpu.memory_space<vmem>>, vector<64x128xf32>
    tpu.vector_store %arg3[%c0_3, %c0_4], %14 {strides = array<i32>} : memref<64x128xf32, #tpu.memory_space<vmem>>, vector<64x128xf32>,
    return
  }
  func.func @transform_0(%arg0: i32) -> (i32, i32) {
    %c0_i32 = arith.constant 0 : i32
    %c0_i32_0 = arith.constant 0 : i32
    %c0_i32_1 = arith.constant 0 : i32
    return %c0_i32, %c0_i32_0 : i32, i32
  }
  func.func @transform_1(%arg0: i32) -> (i32, i32) {
    %c0_i32 = arith.constant 0 : i32
    %c0_i32_0 = arith.constant 0 : i32
    %c0_i32_1 = arith.constant 0 : i32
    return %c0_i32, %c0_i32_0 : i32, i32
  }
  func.func @transform_2(%arg0: i32) -> (i32, i32) {
    %c0_i32 = arith.constant 0 : i32
    %c0_i32_0 = arith.constant 0 : i32
    return %arg0, %c0_i32 : i32, i32
  }
}

</mosaic_0001>

<llo_original>
// kernel: tpu_custom_call.1
$region0: #{tpu_custom_call.1}
  #allocation0 [shape = 'u32[]', space=smem, size = 0x4, offset = 0x4, fixed_abs, tag = 'smem constant byte address 0x4 - core index']
  #allocation1 [shape = 'u32[72,128]{1,0:T(1,128)}', space=vmem, size = 0x9000, scoped, tag = 'internal scratch']
  %s0 = inlined_call_operand.hbm [shape: f32[1,128], index: 0, kind: input, shape index: {}]
  %s1 = inlined_call_operand.hbm [shape: f32[1,128], index: 1, kind: input, shape index: {}]
  %s2 = inlined_call_operand.hbm [shape: f32[64,128], index: 2, kind: output, shape index: {}]
  %s3 = sld [smem:[#allocation0]]
  $region26: #{tpu_custom_call.1} parent=0
    _
  %s5 = ssub.s32 1, %s3
  %s6 = scalar_select 0, %s5, %s3
  $region1: #{tpu_custom_call.1} parent=0
    #allocation2 [shape = 'u8[512]{0}', space=vmem, size = 0x400, scoped, tag = 'input window, operand 0, single buffered']
    #allocation3 [shape = 's32[1]{0}', space=sflag, size = 0x4, scoped, tag = 'scoped memory for tpu_custom_call.1']
    #allocation4 [shape = 's32[1]{0}', space=sflag, size = 0x4, scoped, tag = 'scoped memory for tpu_custom_call.1']
    #allocation5 [shape = 'u8[512]{0}', space=vmem, size = 0x400, scoped, tag = 'input window, operand 1, single buffered']
    #allocation6 [shape = 's32[1]{0}', space=sflag, size = 0x4, scoped, tag = 'scoped memory for tpu_custom_call.1']
    #allocation7 [shape = 'u8[32768]{0}', space=vmem, size = 0x8000, scoped, tag = 'output window, operand 0, single buffered']
    %7 = vsyncpa [#allocation3], 0
    %8 = vsyncpa [#allocation6], 0
    %9 = vsyncpa [#allocation4], 0
    // Predicated region
    $region2: #{tpu_custom_call.1} parent=1 // pred_check
      _
    $region3: #{tpu_custom_call.1} parent=1 // pred_check_branch
      %11 = sbr.rel (0) target = $region5
    $region4: #{tpu_custom_call.1} parent=1 // pred_region
      %13 = vsyncadd [#allocation3], 0
      %s15 = sshll.u32 %s0, 4
      %s16 = int_to_ptr.hbm [resolvable:$true] %s15
      %s17 = sshll.u32 [#allocation2], 4
      %s18 = int_to_ptr.vmem [resolvable:$true] %s17
      %20 = dma.hbm_to_vmem [thread:$0]  %s16, 16, %s18, [#allocation3]
    $region5: #{tpu_custom_call.1} parent=1 // pred_fallthru
      _
    // Predicated region
    $region6: #{tpu_custom_call.1} parent=1 // pred_check
      _
    $region7: #{tpu_custom_call.1} parent=1 // pred_check_branch
      %22 = sbr.rel (0) target = $region9
    $region8: #{tpu_custom_call.1} parent=1 // pred_region
      %24 = vsyncadd [#allocation6], 0
      %s26 = sshll.u32 %s1, 4
      %s27 = int_to_ptr.hbm [resolvable:$true] %s26
      %s28 = sshll.u32 [#allocation5], 4
      %s29 = int_to_ptr.vmem [resolvable:$true] %s28
      %31 = dma.hbm_to_vmem [thread:$0]  %s27, 16, %s29, [#allocation6]
    $region9: #{tpu_custom_call.1} parent=1 // pred_fallthru
      _
    // Predicated region
    $region10: #{tpu_custom_call.1} parent=1 // pred_check
      _
    $region11: #{tpu_custom_call.1} parent=1 // pred_check_branch
      %33 = sbr.rel (0) target = $region13
    $region12: #{tpu_custom_call.1} parent=1 // pred_region
      %35 = dma.done [#allocation3], 16
    $region13: #{tpu_custom_call.1} parent=1 // pred_fallthru
      _
    // Predicated region
    $region14: #{tpu_custom_call.1} parent=1 // pred_check
      _
    $region15: #{tpu_custom_call.1} parent=1 // pred_check_branch
      %37 = sbr.rel (0) target = $region17
    $region16: #{tpu_custom_call.1} parent=1 // pred_region
      %39 = dma.done [#allocation6], 16
    $region17: #{tpu_custom_call.1} parent=1 // pred_fallthru
      _
    %s40 = smul.u32 0, 64
    %v41 = vlaneseq
    %v42 = vshrl.u32 %v41, 7
    %v43 = vadd.s32 %v42, 8
    %v44 = vadd.s32 %v42, 16
    %v45 = vadd.s32 %v42, 24
    %v46 = vadd.s32 %v42, 32
    %v47 = vadd.s32 %v42, 40
    %v48 = vadd.s32 %v42, 48
    %v49 = vadd.s32 %v42, 56
    %v50 = vstv %s40
    %v51 = vadd.s32 %v42, %v50
    %v52 = vadd.s32 %v43, %v50
    %v53 = vadd.s32 %v44, %v50
    %v54 = vadd.s32 %v45, %v50
    %v55 = vadd.s32 %v46, %v50
    %v56 = vadd.s32 %v47, %v50
    %v57 = vadd.s32 %v48, %v50
    %v58 = vadd.s32 %v49, %v50
    %v59 = vmul.u32 %v51, 4
    %v60 = vmul.u32 %v52, 4
    %v61 = vmul.u32 %v53, 4
    %v62 = vmul.u32 %v54, 4
    %v63 = vmul.u32 %v55, 4
    %v64 = vmul.u32 %v56, 4
    %v65 = vmul.u32 %v57, 4
    %v66 = vmul.u32 %v58, 4
    %v67 = vcvt.s32.f32 %v59
    %v68 = vcvt.s32.f32 %v60
    %v69 = vcvt.s32.f32 %v61
    %v70 = vcvt.s32.f32 %v62
    %v71 = vcvt.s32.f32 %v63
    %v72 = vcvt.s32.f32 %v64
    %v73 = vcvt.s32.f32 %v65
    %v74 = vcvt.s32.f32 %v66
    %v75 = vld [vmem:[#allocation2] sm:$0x1]
    %v77 = vperm.slane %v75, 0
    %v79 = vmul.f32 %v67, %v77
    %v80 = vmul.f32 %v68, %v77
    %v81 = vmul.f32 %v69, %v77
    %v82 = vmul.f32 %v70, %v77
    %v83 = vmul.f32 %v71, %v77
    %v84 = vmul.f32 %v72, %v77
    %v85 = vmul.f32 %v73, %v77
    %v86 = vmul.f32 %v74, %v77
    %v87 = vld [vmem:[#allocation5] sm:$0x1]
    %v89 = vperm.slane %v87, 0
    %v91 = vadd.f32 %v79, %v89
    %v92 = vadd.f32 %v80, %v89
    %v93 = vadd.f32 %v81, %v89
    %v94 = vadd.f32 %v82, %v89
    %v95 = vadd.f32 %v83, %v89
    %v96 = vadd.f32 %v84, %v89
    %v97 = vadd.f32 %v85, %v89
    %v98 = vadd.f32 %v86, %v89
    %v99 = vand.u32 2147483647, %v91
    %vm100 = vcmp.le.f32.partialorder %v99, 0.7853982
    %vm101 = vcmp.lt.s32.totalorder %v91, 0
    %v102 = vand.u32 %v91, 2139095040
    %v103 = vshrl.u32 %v102, 23
    %v104 = vsub.s32 %v103, 127
    %v105 = vand.u32 2147483647, %v91
    %v106 = vand.u32 %v105, 8388607
    %v107 = vor.u32 %v106, 8388608
    %v108 = vsub.s32 0, %v107
    %v109 = vadd.s32 %v104, 1
    %vm110 = vcmp.gt.s32.totalorder %v109, 0
    %v111 = vsel %vm110, %v109, 0
    %v112 = vshrl.u32 %v111, 5
    %v113 = vand.u32 %v111, 31
    %v114 = vsub.s32 32, %v113
    %v115 = vshrl.u32 683565275, %v114
    %v116 = vshll.u32 683565275, %v113
    %v117 = vshrl.u32 2475754826, %v114
    %v118 = vor.u32 %v116, %v117
    %v119 = vshll.u32 2475754826, %v113
    %v120 = vshrl.u32 2131351028, %v114
    %v121 = vor.u32 %v119, %v120
    %v122 = vshll.u32 2131351028, %v113
    %v123 = vshrl.u32 2102212464, %v114
    %v124 = vor.u32 %v122, %v123
    %v125 = vshll.u32 2102212464, %v113
    %v126 = vshrl.u32 920167782, %v114
    %v127 = vor.u32 %v125, %v126
    %v128 = vshll.u32 920167782, %v113
    %v129 = vshrl.u32 1326507024, %v114
    %v130 = vor.u32 %v128, %v129
    %vm131 = vcmp.lt.s32.totalorder %v112, 1
    %vm132 = vcmp.lt.s32.totalorder %v112, 2
    %vm133 = vcmp.lt.s32.totalorder %v112, 3
    %vm134 = vcmp.lt.s32.totalorder %v112, 4
    %v135 = vsel %vm131, %v115, %v118
    %v136 = vsel %vm134, %v124, 2102212464
    %v137 = vsel %vm133, %v121, %v136
    %v138 = vsel %vm132, %v135, %v137
    %v139 = vsel %vm131, %v118, %v121
    %v140 = vsel %vm134, %v127, 920167782
    %v141 = vsel %vm133, %v124, %v140
    %v142 = vsel %vm132, %v139, %v141
    %v143 = vsel %vm131, %v121, %v124
    %v144 = vsel %vm134, %v130, 1326507024
    %v145 = vsel %vm133, %v127, %v144
    %v146 = vsel %vm132, %v143, %v145
    %v147 = vshll.u32 %v107, 8
    %v148 = vand.u32 %v147, 65535
    %v149 = vshrl.u32 %v147, 16
    %v150 = vand.u32 %v146, 65535
    %v151 = vshrl.u32 %v146, 16
    %v152 = vmul.u32 %v148, %v150
    %v153 = vmul.u32 %v148, %v151
    %v154 = vmul.u32 %v149, %v150
    %v155 = vmul.u32 %v149, %v151
    %v156 = vshll.u32 %v153, 16
    %v157 = vshrl.u32 %v153, 16
    %v158 = vshll.u32 %v154, 16
    %v159 = vshrl.u32 %v154, 16
    %vm160 = vc.u32 %v152, %v156
    %v161 = vsel %vm160, 1, 0
    %v162 = vadd.s32 %v152, %v156
    %v163 = vadd.s32 %v155, %v161
    %vm164 = vc.u32 %v162, %v158
    %v165 = vsel %vm164, 1, 0
    %v166 = vadd.s32 %v162, %v158
    %v167 = vadd.s32 %v163, %v165
    %v168 = vadd.s32 %v167, %v157
    %v169 = vadd.s32 %v168, %v159
    %v170 = vand.u32 %v147, 65535
    %v171 = vshrl.u32 %v147, 16
    %v172 = vand.u32 %v142, 65535
    %v173 = vshrl.u32 %v142, 16
    %v174 = vmul.u32 %v170, %v172
    %v175 = vmul.u32 %v170, %v173
    %v176 = vmul.u32 %v171, %v172
    %v177 = vmul.u32 %v171, %v173
    %v178 = vshll.u32 %v175, 16
    %v179 = vshrl.u32 %v175, 16
    %v180 = vshll.u32 %v176, 16
    %v181 = vshrl.u32 %v176, 16
    %vm182 = vc.u32 %v174, %v178
    %v183 = vsel %vm182, 1, 0
    %v184 = vadd.s32 %v174, %v178
    %v185 = vadd.s32 %v177, %v183
    %vm186 = vc.u32 %v184, %v180
    %v187 = vsel %vm186, 1, 0
    %v188 = vadd.s32 %v184, %v180
    %v189 = vadd.s32 %v185, %v187
    %v190 = vadd.s32 %v189, %v179
    %v191 = vadd.s32 %v190, %v181
    %v192 = vmul.u32 %v147, %v138
    %v193 = vadd.s32 %v169, %v188
    %vm194 = vc.u32 %v169, %v188
    %v195 = vadd.s32 %v191, 1
    %v196 = vsel %vm194, %v195, %v191
    %v197 = vadd.s32 %v192, %v196
    %v198 = vadd.s32 %v197, 536870912
    %v199 = vshrl.u32 %v198, 30
    %v200 = vshll.u32 %v199, 30
    %v201 = vsub.s32 %v197, %v200
    %vm202 = vcmp.lt.s32.totalorder %v201, 0
    %v203 = vsub.s32 0, %v201
    %v204 = vsel %vm202, %v203, %v201
    %v205 = vclz %v204
    %v206 = vsub.s32 %v205, 2
    %vm207 = vcmp.gt.s32.totalorder 0, %v206
    %v208 = vsel %vm207, 0, %v206
    %v209 = vsub.s32 32, %v208
    %v210 = vshll.u32 %v201, %v208
    %v211 = vshrl.u32 %v193, %v209
    %v212 = vor.u32 %v210, %v211
    %v213 = vsub.s32 4294967266, %v208
    %v214 = vadd.s32 %v213, 127
    %v215 = vshll.u32 %v214, 23
    %v216 = vor.u32 4788187, %v215
    %v217 = vand.u32 2147483647, %v216
    %v219 = vcvt.s32.f32 %v212
    %v220 = vmul.f32 %v219, %v217
    %v221 = vxor.u32 %v220, 2147483648
    %v222 = vsel %vm101, %v221, %v220
    %v223 = vsub.s32 4, %v199
    %v224 = vsel %vm101, %v223, %v199
    %v225 = vsel %vm100, %v91, %v222
    %v226 = vsel %vm100, 0, %v224
    %v227 = vmul.f32 %v225, %v225
    %v228 = vmul.f32 %v227, -0.001358992
    %v229 = vadd.f32 %v228, 0.041655596
    %v230 = vmul.f32 %v227, %v229
    %v231 = vadd.f32 %v230, -0.4999988
    %v232 = vmul.f32 %v227, %v231
    %v233 = vadd.f32 1.0, %v232
    %v234 = vmul.f32 %v225, %v225
    %v235 = vmul.f32 %v234, -0.00019511016
    %v236 = vadd.f32 %v235, 0.008332121
    %v237 = vmul.f32 %v234, %v236
    %v238 = vadd.f32 %v237, -0.16666654
    %v239 = vmul.f32 %v234, %v238
    %v240 = vadd.f32 %v239, 1.0
    %v241 = vmul.f32 %v240, %v225
    %vm242 = vweird.f32 %v91
    %v243 = vadd.s32 %v226, 3
    %v244 = vand.u32 %v243, 3
    %vm245 = vcmp.lt.s32.totalorder %v244, 2
    %vm246 = vcmp.eq.s32.totalorder %v244, 0
    %v247 = vxor.u32 %v241, 2147483648
    %v248 = vsel %vm246, %v233, %v247
    %vm249 = vcmp.eq.s32.totalorder %v244, 2
    %v250 = vxor.u32 %v233, 2147483648
    %v251 = vsel %vm249, %v250, %v241
    %v252 = vsel %vm245, %v248, %v251
    %v253 = vsel %vm242, nan, %v252
    %v254 = vand.u32 2147483647, %v92
    %vm255 = vcmp.le.f32.partialorder %v254, 0.7853982
    %vm256 = vcmp.lt.s32.totalorder %v92, 0
    %v257 = vand.u32 %v92, 2139095040
    %v258 = vshrl.u32 %v257, 23
    %v259 = vsub.s32 %v258, 127
    %v260 = vand.u32 2147483647, %v92
    %v261 = vand.u32 %v260, 8388607
    %v262 = vor.u32 %v261, 8388608
    %v263 = vsub.s32 0, %v262
    %v264 = vadd.s32 %v259, 1
    %vm265 = vcmp.gt.s32.totalorder %v264, 0
    %v266 = vsel %vm265, %v264, 0
    %v267 = vshrl.u32 %v266, 5
    %v268 = vand.u32 %v266, 31
    %v269 = vsub.s32 32, %v268
    %v270 = vshrl.u32 683565275, %v269
    %v271 = vshll.u32 683565275, %v268
    %v272 = vshrl.u32 2475754826, %v269
    %v273 = vor.u32 %v271, %v272
    %v274 = vshll.u32 2475754826, %v268
    %v275 = vshrl.u32 2131351028, %v269
    %v276 = vor.u32 %v274, %v275
    %v277 = vshll.u32 2131351028, %v268
    %v278 = vshrl.u32 2102212464, %v269
    %v279 = vor.u32 %v277, %v278
    %v280 = vshll.u32 2102212464, %v268
    %v281 = vshrl.u32 920167782, %v269
    %v282 = vor.u32 %v280, %v281
    %v283 = vshll.u32 920167782, %v268
    %v284 = vshrl.u32 1326507024, %v269
    %v285 = vor.u32 %v283, %v284
    %vm286 = vcmp.lt.s32.totalorder %v267, 1
    %vm287 = vcmp.lt.s32.totalorder %v267, 2
    %vm288 = vcmp.lt.s32.totalorder %v267, 3
    %vm289 = vcmp.lt.s32.totalorder %v267, 4
    %v290 = vsel %vm286, %v270, %v273
    %v291 = vsel %vm289, %v279, 2102212464
    %v292 = vsel %vm288, %v276, %v291
    %v293 = vsel %vm287, %v290, %v292
    %v294 = vsel %vm286, %v273, %v276
    %v295 = vsel %vm289, %v282, 920167782
    %v296 = vsel %vm288, %v279, %v295
    %v297 = vsel %vm287, %v294, %v296
    %v298 = vsel %vm286, %v276, %v279
    %v299 = vsel %vm289, %v285, 1326507024
    %v300 = vsel %vm288, %v282, %v299
    %v301 = vsel %vm287, %v298, %v300
    %v302 = vshll.u32 %v262, 8
    %v303 = vand.u32 %v302, 65535
    %v304 = vshrl.u32 %v302, 16
    %v305 = vand.u32 %v301, 65535
    %v306 = vshrl.u32 %v301, 16
    %v307 = vmul.u32 %v303, %v305
    %v308 = vmul.u32 %v303, %v306
    %v309 = vmul.u32 %v304, %v305
    %v310 = vmul.u32 %v304, %v306
    %v311 = vshll.u32 %v308, 16
    %v312 = vshrl.u32 %v308, 16
    %v313 = vshll.u32 %v309, 16
    %v314 = vshrl.u32 %v309, 16
    %vm315 = vc.u32 %v307, %v311
    %v316 = vsel %vm315, 1, 0
    %v317 = vadd.s32 %v307, %v311
    %v318 = vadd.s32 %v310, %v316
    %vm319 = vc.u32 %v317, %v313
    %v320 = vsel %vm319, 1, 0
    %v321 = vadd.s32 %v317, %v313
    %v322 = vadd.s32 %v318, %v320
    %v323 = vadd.s32 %v322, %v312
    %v324 = vadd.s32 %v323, %v314
    %v325 = vand.u32 %v302, 65535
    %v326 = vshrl.u32 %v302, 16
    %v327 = vand.u32 %v297, 65535
    %v328 = vshrl.u32 %v297, 16
    %v329 = vmul.u32 %v325, %v327
    %v330 = vmul.u32 %v325, %v328
    %v331 = vmul.u32 %v326, %v327
    %v332 = vmul.u32 %v326, %v328
    %v333 = vshll.u32 %v330, 16
    %v334 = vshrl.u32 %v330, 16
    %v335 = vshll.u32 %v331, 16
    %v336 = vshrl.u32 %v331, 16
    %vm337 = vc.u32 %v329, %v333
    %v338 = vsel %vm337, 1, 0
    %v339 = vadd.s32 %v329, %v333
    %v340 = vadd.s32 %v332, %v338
    %vm341 = vc.u32 %v339, %v335
    %v342 = vsel %vm341, 1, 0
    %v343 = vadd.s32 %v339, %v335
    %v344 = vadd.s32 %v340, %v342
    %v345 = vadd.s32 %v344, %v334
    %v346 = vadd.s32 %v345, %v336
    %v347 = vmul.u32 %v302, %v293
    %v348 = vadd.s32 %v324, %v343
    %vm349 = vc.u32 %v324, %v343
    %v350 = vadd.s32 %v346, 1
    %v351 = vsel %vm349, %v350, %v346
    %v352 = vadd.s32 %v347, %v351
    %v353 = vadd.s32 %v352, 536870912
    %v354 = vshrl.u32 %v353, 30
    %v355 = vshll.u32 %v354, 30
    %v356 = vsub.s32 %v352, %v355
    %vm357 = vcmp.lt.s32.totalorder %v356, 0
    %v358 = vsub.s32 0, %v356
    %v359 = vsel %vm357, %v358, %v356
    %v360 = vclz %v359
    %v361 = vsub.s32 %v360, 2
    %vm362 = vcmp.gt.s32.totalorder 0, %v361
    %v363 = vsel %vm362, 0, %v361
    %v364 = vsub.s32 32, %v363
    %v365 = vshll.u32 %v356, %v363
    %v366 = vshrl.u32 %v348, %v364
    %v367 = vor.u32 %v365, %v366
    %v368 = vsub.s32 4294967266, %v363
    %v369 = vadd.s32 %v368, 127
    %v370 = vshll.u32 %v369, 23
    %v371 = vor.u32 4788187, %v370
    %v372 = vand.u32 2147483647, %v371
    %v374 = vcvt.s32.f32 %v367
    %v375 = vmul.f32 %v374, %v372
    %v376 = vxor.u32 %v375, 2147483648
    %v377 = vsel %vm256, %v376, %v375
    %v378 = vsub.s32 4, %v354
    %v379 = vsel %vm256, %v378, %v354
    %v380 = vsel %vm255, %v92, %v377
    %v381 = vsel %vm255, 0, %v379
    %v382 = vmul.f32 %v380, %v380
    %v383 = vmul.f32 %v382, -0.001358992
    %v384 = vadd.f32 %v383, 0.041655596
    %v385 = vmul.f32 %v382, %v384
    %v386 = vadd.f32 %v385, -0.4999988
    %v387 = vmul.f32 %v382, %v386
    %v388 = vadd.f32 1.0, %v387
    %v389 = vmul.f32 %v380, %v380
    %v390 = vmul.f32 %v389, -0.00019511016
    %v391 = vadd.f32 %v390, 0.008332121
    %v392 = vmul.f32 %v389, %v391
    %v393 = vadd.f32 %v392, -0.16666654
    %v394 = vmul.f32 %v389, %v393
    %v395 = vadd.f32 %v394, 1.0
    %v396 = vmul.f32 %v395, %v380
    %vm397 = vweird.f32 %v92
    %v398 = vadd.s32 %v381, 3
    %v399 = vand.u32 %v398, 3
    %vm400 = vcmp.lt.s32.totalorder %v399, 2
    %vm401 = vcmp.eq.s32.totalorder %v399, 0
    %v402 = vxor.u32 %v396, 2147483648
    %v403 = vsel %vm401, %v388, %v402
    %vm404 = vcmp.eq.s32.totalorder %v399, 2
    %v405 = vxor.u32 %v388, 2147483648
    %v406 = vsel %vm404, %v405, %v396
    %v407 = vsel %vm400, %v403, %v406
    %v408 = vsel %vm397, nan, %v407
    %v409 = vand.u32 2147483647, %v93
    %vm410 = vcmp.le.f32.partialorder %v409, 0.7853982
    %vm411 = vcmp.lt.s32.totalorder %v93, 0
    %v412 = vand.u32 %v93, 2139095040
    %v413 = vshrl.u32 %v412, 23
    %v414 = vsub.s32 %v413, 127
    %v415 = vand.u32 2147483647, %v93
    %v416 = vand.u32 %v415, 8388607
    %v417 = vor.u32 %v416, 8388608
    %v418 = vsub.s32 0, %v417
    %v419 = vadd.s32 %v414, 1
    %vm420 = vcmp.gt.s32.totalorder %v419, 0
    %v421 = vsel %vm420, %v419, 0
    %v422 = vshrl.u32 %v421, 5
    %v423 = vand.u32 %v421, 31
    %v424 = vsub.s32 32, %v423
    %v425 = vshrl.u32 683565275, %v424
    %v426 = vshll.u32 683565275, %v423
    %v427 = vshrl.u32 2475754826, %v424
    %v428 = vor.u32 %v426, %v427
    %v429 = vshll.u32 2475754826, %v423
    %v430 = vshrl.u32 2131351028, %v424
    %v431 = vor.u32 %v429, %v430
    %v432 = vshll.u32 2131351028, %v423
    %v433 = vshrl.u32 2102212464, %v424
    %v434 = vor.u32 %v432, %v433
    %v435 = vshll.u32 2102212464, %v423
    %v436 = vshrl.u32 920167782, %v424
    %v437 = vor.u32 %v435, %v436
    %v438 = vshll.u32 920167782, %v423
    %v439 = vshrl.u32 1326507024, %v424
    %v440 = vor.u32 %v438, %v439
    %vm441 = vcmp.lt.s32.totalorder %v422, 1
    %vm442 = vcmp.lt.s32.totalorder %v422, 2
    %vm443 = vcmp.lt.s32.totalorder %v422, 3
    %vm444 = vcmp.lt.s32.totalorder %v422, 4
    %v445 = vsel %vm441, %v425, %v428
    %v446 = vsel %vm444, %v434, 2102212464
    %v447 = vsel %vm443, %v431, %v446
    %v448 = vsel %vm442, %v445, %v447
    %v449 = vsel %vm441, %v428, %v431
    %v450 = vsel %vm444, %v437, 920167782
    %v451 = vsel %vm443, %v434, %v450
    %v452 = vsel %vm442, %v449, %v451
    %v453 = vsel %vm441, %v431, %v434
    %v454 = vsel %vm444, %v440, 1326507024
    %v455 = vsel %vm443, %v437, %v454
    %v456 = vsel %vm442, %v453, %v455
    %v457 = vshll.u32 %v417, 8
    %v458 = vand.u32 %v457, 65535
    %v459 = vshrl.u32 %v457, 16
    %v460 = vand.u32 %v456, 65535
    %v461 = vshrl.u32 %v456, 16
    %v462 = vmul.u32 %v458, %v460
    %v463 = vmul.u32 %v458, %v461
    %v464 = vmul.u32 %v459, %v460
    %v465 = vmul.u32 %v459, %v461
    %v466 = vshll.u32 %v463, 16
    %v467 = vshrl.u32 %v463, 16
    %v468 = vshll.u32 %v464, 16
    %v469 = vshrl.u32 %v464, 16
    %vm470 = vc.u32 %v462, %v466
    %v471 = vsel %vm470, 1, 0
    %v472 = vadd.s32 %v462, %v466
    %v473 = vadd.s32 %v465, %v471
    %vm474 = vc.u32 %v472, %v468
    %v475 = vsel %vm474, 1, 0
    %v476 = vadd.s32 %v472, %v468
    %v477 = vadd.s32 %v473, %v475
    %v478 = vadd.s32 %v477, %v467
    %v479 = vadd.s32 %v478, %v469
    %v480 = vand.u32 %v457, 65535
    %v481 = vshrl.u32 %v457, 16
    %v482 = vand.u32 %v452, 65535
    %v483 = vshrl.u32 %v452, 16
    %v484 = vmul.u32 %v480, %v482
    %v485 = vmul.u32 %v480, %v483
    %v486 = vmul.u32 %v481, %v482
    %v487 = vmul.u32 %v481, %v483
    %v488 = vshll.u32 %v485, 16
    %v489 = vshrl.u32 %v485, 16
    %v490 = vshll.u32 %v486, 16
    %v491 = vshrl.u32 %v486, 16
    %vm492 = vc.u32 %v484, %v488
    %v493 = vsel %vm492, 1, 0
    %v494 = vadd.s32 %v484, %v488
    %v495 = vadd.s32 %v487, %v493
    %vm496 = vc.u32 %v494, %v490
    %v497 = vsel %vm496, 1, 0
    %v498 = vadd.s32 %v494, %v490
    %v499 = vadd.s32 %v495, %v497
    %v500 = vadd.s32 %v499, %v489
    %v501 = vadd.s32 %v500, %v491
    %v502 = vmul.u32 %v457, %v448
    %v503 = vadd.s32 %v479, %v498
    %vm504 = vc.u32 %v479, %v498
    %v505 = vadd.s32 %v501, 1
    %v506 = vsel %vm504, %v505, %v501
    %v507 = vadd.s32 %v502, %v506
    %v508 = vadd.s32 %v507, 536870912
    %v509 = vshrl.u32 %v508, 30
    %v510 = vshll.u32 %v509, 30
    %v511 = vsub.s32 %v507, %v510
    %vm512 = vcmp.lt.s32.totalorder %v511, 0
    %v513 = vsub.s32 0, %v511
    %v514 = vsel %vm512, %v513, %v511
    %v515 = vclz %v514
    %v516 = vsub.s32 %v515, 2
    %vm517 = vcmp.gt.s32.totalorder 0, %v516
    %v518 = vsel %vm517, 0, %v516
    %v519 = vsub.s32 32, %v518
    %v520 = vshll.u32 %v511, %v518
    %v521 = vshrl.u32 %v503, %v519
    %v522 = vor.u32 %v520, %v521
    %v523 = vsub.s32 4294967266, %v518
    %v524 = vadd.s32 %v523, 127
    %v525 = vshll.u32 %v524, 23
    %v526 = vor.u32 4788187, %v525
    %v527 = vand.u32 2147483647, %v526
    %v529 = vcvt.s32.f32 %v522
    %v530 = vmul.f32 %v529, %v527
    %v531 = vxor.u32 %v530, 2147483648
    %v532 = vsel %vm411, %v531, %v530
    %v533 = vsub.s32 4, %v509
    %v534 = vsel %vm411, %v533, %v509
    %v535 = vsel %vm410, %v93, %v532
    %v536 = vsel %vm410, 0, %v534
    %v537 = vmul.f32 %v535, %v535
    %v538 = vmul.f32 %v537, -0.001358992
    %v539 = vadd.f32 %v538, 0.041655596
    %v540 = vmul.f32 %v537, %v539
    %v541 = vadd.f32 %v540, -0.4999988
    %v542 = vmul.f32 %v537, %v541
    %v543 = vadd.f32 1.0, %v542
    %v544 = vmul.f32 %v535, %v535
    %v545 = vmul.f32 %v544, -0.00019511016
    %v546 = vadd.f32 %v545, 0.008332121
    %v547 = vmul.f32 %v544, %v546
    %v548 = vadd.f32 %v547, -0.16666654
    %v549 = vmul.f32 %v544, %v548
    %v550 = vadd.f32 %v549, 1.0
    %v551 = vmul.f32 %v550, %v535
    %vm552 = vweird.f32 %v93
    %v553 = vadd.s32 %v536, 3
    %v554 = vand.u32 %v553, 3
    %vm555 = vcmp.lt.s32.totalorder %v554, 2
    %vm556 = vcmp.eq.s32.totalorder %v554, 0
    %v557 = vxor.u32 %v551, 2147483648
    %v558 = vsel %vm556, %v543, %v557
    %vm559 = vcmp.eq.s32.totalorder %v554, 2
    %v560 = vxor.u32 %v543, 2147483648
    %v561 = vsel %vm559, %v560, %v551
    %v562 = vsel %vm555, %v558, %v561
    %v563 = vsel %vm552, nan, %v562
    %v564 = vand.u32 2147483647, %v94
    %vm565 = vcmp.le.f32.partialorder %v564, 0.7853982
    %vm566 = vcmp.lt.s32.totalorder %v94, 0
    %v567 = vand.u32 %v94, 2139095040
    %v568 = vshrl.u32 %v567, 23
    %v569 = vsub.s32 %v568, 127
    %v570 = vand.u32 2147483647, %v94
    %v571 = vand.u32 %v570, 8388607
    %v572 = vor.u32 %v571, 8388608
    %v573 = vsub.s32 0, %v572
    %v574 = vadd.s32 %v569, 1
    %vm575 = vcmp.gt.s32.totalorder %v574, 0
    %v576 = vsel %vm575, %v574, 0
    %v577 = vshrl.u32 %v576, 5
    %v578 = vand.u32 %v576, 31
    %v579 = vsub.s32 32, %v578
    %v580 = vshrl.u32 683565275, %v579
    %v581 = vshll.u32 683565275, %v578
    %v582 = vshrl.u32 2475754826, %v579
    %v583 = vor.u32 %v581, %v582
    %v584 = vshll.u32 2475754826, %v578
    %v585 = vshrl.u32 2131351028, %v579
    %v586 = vor.u32 %v584, %v585
    %v587 = vshll.u32 2131351028, %v578
    %v588 = vshrl.u32 2102212464, %v579
    %v589 = vor.u32 %v587, %v588
    %v590 = vshll.u32 2102212464, %v578
    %v591 = vshrl.u32 920167782, %v579
    %v592 = vor.u32 %v590, %v591
    %v593 = vshll.u32 920167782, %v578
    %v594 = vshrl.u32 1326507024, %v579
    %v595 = vor.u32 %v593, %v594
    %vm596 = vcmp.lt.s32.totalorder %v577, 1
    %vm597 = vcmp.lt.s32.totalorder %v577, 2
    %vm598 = vcmp.lt.s32.totalorder %v577, 3
    %vm599 = vcmp.lt.s32.totalorder %v577, 4
    %v600 = vsel %vm596, %v580, %v583
    %v601 = vsel %vm599, %v589, 2102212464
    %v602 = vsel %vm598, %v586, %v601
    %v603 = vsel %vm597, %v600, %v602
    %v604 = vsel %vm596, %v583, %v586
    %v605 = vsel %vm599, %v592, 920167782
    %v606 = vsel %vm598, %v589, %v605
    %v607 = vsel %vm597, %v604, %v606
    %v608 = vsel %vm596, %v586, %v589
    %v609 = vsel %vm599, %v595, 1326507024
    %v610 = vsel %vm598, %v592, %v609
    %v611 = vsel %vm597, %v608, %v610
    %v612 = vshll.u32 %v572, 8
    %v613 = vand.u32 %v612, 65535
    %v614 = vshrl.u32 %v612, 16
    %v615 = vand.u32 %v611, 65535
    %v616 = vshrl.u32 %v611, 16
    %v617 = vmul.u32 %v613, %v615
    %v618 = vmul.u32 %v613, %v616
    %v619 = vmul.u32 %v614, %v615
    %v620 = vmul.u32 %v614, %v616
    %v621 = vshll.u32 %v618, 16
    %v622 = vshrl.u32 %v618, 16
    %v623 = vshll.u32 %v619, 16
    %v624 = vshrl.u32 %v619, 16
    %vm625 = vc.u32 %v617, %v621
    %v626 = vsel %vm625, 1, 0
    %v627 = vadd.s32 %v617, %v621
    %v628 = vadd.s32 %v620, %v626
    %vm629 = vc.u32 %v627, %v623
    %v630 = vsel %vm629, 1, 0
    %v631 = vadd.s32 %v627, %v623
    %v632 = vadd.s32 %v628, %v630
    %v633 = vadd.s32 %v632, %v622
    %v634 = vadd.s32 %v633, %v624
    %v635 = vand.u32 %v612, 65535
    %v636 = vshrl.u32 %v612, 16
    %v637 = vand.u32 %v607, 65535
    %v638 = vshrl.u32 %v607, 16
    %v639 = vmul.u32 %v635, %v637
    %v640 = vmul.u32 %v635, %v638
    %v641 = vmul.u32 %v636, %v637
    %v642 = vmul.u32 %v636, %v638
    %v643 = vshll.u32 %v640, 16
    %v644 = vshrl.u32 %v640, 16
    %v645 = vshll.u32 %v641, 16
    %v646 = vshrl.u32 %v641, 16
    %vm647 = vc.u32 %v639, %v643
    %v648 = vsel %vm647, 1, 0
    %v649 = vadd.s32 %v639, %v643
    %v650 = vadd.s32 %v642, %v648
    %vm651 = vc.u32 %v649, %v645
    %v652 = vsel %vm651, 1, 0
    %v653 = vadd.s32 %v649, %v645
    %v654 = vadd.s32 %v650, %v652
    %v655 = vadd.s32 %v654, %v644
    %v656 = vadd.s32 %v655, %v646
    %v657 = vmul.u32 %v612, %v603
    %v658 = vadd.s32 %v634, %v653
    %vm659 = vc.u32 %v634, %v653
    %v660 = vadd.s32 %v656, 1
    %v661 = vsel %vm659, %v660, %v656
    %v662 = vadd.s32 %v657, %v661
    %v663 = vadd.s32 %v662, 536870912
    %v664 = vshrl.u32 %v663, 30
    %v665 = vshll.u32 %v664, 30
    %v666 = vsub.s32 %v662, %v665
    %vm667 = vcmp.lt.s32.totalorder %v666, 0
    %v668 = vsub.s32 0, %v666
    %v669 = vsel %vm667, %v668, %v666
    %v670 = vclz %v669
    %v671 = vsub.s32 %v670, 2
    %vm672 = vcmp.gt.s32.totalorder 0, %v671
    %v673 = vsel %vm672, 0, %v671
    %v674 = vsub.s32 32, %v673
    %v675 = vshll.u32 %v666, %v673
    %v676 = vshrl.u32 %v658, %v674
    %v677 = vor.u32 %v675, %v676
    %v678 = vsub.s32 4294967266, %v673
    %v679 = vadd.s32 %v678, 127
    %v680 = vshll.u32 %v679, 23
    %v681 = vor.u32 4788187, %v680
    %v682 = vand.u32 2147483647, %v681
    %v684 = vcvt.s32.f32 %v677
    %v685 = vmul.f32 %v684, %v682
    %v686 = vxor.u32 %v685, 2147483648
    %v687 = vsel %vm566, %v686, %v685
    %v688 = vsub.s32 4, %v664
    %v689 = vsel %vm566, %v688, %v664
    %v690 = vsel %vm565, %v94, %v687
    %v691 = vsel %vm565, 0, %v689
    %v692 = vmul.f32 %v690, %v690
    %v693 = vmul.f32 %v692, -0.001358992
    %v694 = vadd.f32 %v693, 0.041655596
    %v695 = vmul.f32 %v692, %v694
    %v696 = vadd.f32 %v695, -0.4999988
    %v697 = vmul.f32 %v692, %v696
    %v698 = vadd.f32 1.0, %v697
    %v699 = vmul.f32 %v690, %v690
    %v700 = vmul.f32 %v699, -0.00019511016
    %v701 = vadd.f32 %v700, 0.008332121
    %v702 = vmul.f32 %v699, %v701
    %v703 = vadd.f32 %v702, -0.16666654
    %v704 = vmul.f32 %v699, %v703
    %v705 = vadd.f32 %v704, 1.0
    %v706 = vmul.f32 %v705, %v690
    %vm707 = vweird.f32 %v94
    %v708 = vadd.s32 %v691, 3
    %v709 = vand.u32 %v708, 3
    %vm710 = vcmp.lt.s32.totalorder %v709, 2
    %vm711 = vcmp.eq.s32.totalorder %v709, 0
    %v712 = vxor.u32 %v706, 2147483648
    %v713 = vsel %vm711, %v698, %v712
    %vm714 = vcmp.eq.s32.totalorder %v709, 2
    %v715 = vxor.u32 %v698, 2147483648
    %v716 = vsel %vm714, %v715, %v706
    %v717 = vsel %vm710, %v713, %v716
    %v718 = vsel %vm707, nan, %v717
    %v719 = vand.u32 2147483647, %v95
    %vm720 = vcmp.le.f32.partialorder %v719, 0.7853982
    %vm721 = vcmp.lt.s32.totalorder %v95, 0
    %v722 = vand.u32 %v95, 2139095040
    %v723 = vshrl.u32 %v722, 23
    %v724 = vsub.s32 %v723, 127
    %v725 = vand.u32 2147483647, %v95
    %v726 = vand.u32 %v725, 8388607
    %v727 = vor.u32 %v726, 8388608
    %v728 = vsub.s32 0, %v727
    %v729 = vadd.s32 %v724, 1
    %vm730 = vcmp.gt.s32.totalorder %v729, 0
    %v731 = vsel %vm730, %v729, 0
    %v732 = vshrl.u32 %v731, 5
    %v733 = vand.u32 %v731, 31
    %v734 = vsub.s32 32, %v733
    %v735 = vshrl.u32 683565275, %v734
    %v736 = vshll.u32 683565275, %v733
    %v737 = vshrl.u32 2475754826, %v734
    %v738 = vor.u32 %v736, %v737
    %v739 = vshll.u32 2475754826, %v733
    %v740 = vshrl.u32 2131351028, %v734
    %v741 = vor.u32 %v739, %v740
    %v742 = vshll.u32 2131351028, %v733
    %v743 = vshrl.u32 2102212464, %v734
    %v744 = vor.u32 %v742, %v743
    %v745 = vshll.u32 2102212464, %v733
    %v746 = vshrl.u32 920167782, %v734
    %v747 = vor.u32 %v745, %v746
    %v748 = vshll.u32 920167782, %v733
    %v749 = vshrl.u32 1326507024, %v734
    %v750 = vor.u32 %v748, %v749
    %vm751 = vcmp.lt.s32.totalorder %v732, 1
    %vm752 = vcmp.lt.s32.totalorder %v732, 2
    %vm753 = vcmp.lt.s32.totalorder %v732, 3
    %vm754 = vcmp.lt.s32.totalorder %v732, 4
    %v755 = vsel %vm751, %v735, %v738
    %v756 = vsel %vm754, %v744, 2102212464
    %v757 = vsel %vm753, %v741, %v756
    %v758 = vsel %vm752, %v755, %v757
    %v759 = vsel %vm751, %v738, %v741
    %v760 = vsel %vm754, %v747, 920167782
    %v761 = vsel %vm753, %v744, %v760
    %v762 = vsel %vm752, %v759, %v761
    %v763 = vsel %vm751, %v741, %v744
    %v764 = vsel %vm754, %v750, 1326507024
    %v765 = vsel %vm753, %v747, %v764
    %v766 = vsel %vm752, %v763, %v765
    %v767 = vshll.u32 %v727, 8
    %v768 = vand.u32 %v767, 65535
    %v769 = vshrl.u32 %v767, 16
    %v770 = vand.u32 %v766, 65535
    %v771 = vshrl.u32 %v766, 16
    %v772 = vmul.u32 %v768, %v770
    %v773 = vmul.u32 %v768, %v771
    %v774 = vmul.u32 %v769, %v770
    %v775 = vmul.u32 %v769, %v771
    %v776 = vshll.u32 %v773, 16
    %v777 = vshrl.u32 %v773, 16
    %v778 = vshll.u32 %v774, 16
    %v779 = vshrl.u32 %v774, 16
    %vm780 = vc.u32 %v772, %v776
    %v781 = vsel %vm780, 1, 0
    %v782 = vadd.s32 %v772, %v776
    %v783 = vadd.s32 %v775, %v781
    %vm784 = vc.u32 %v782, %v778
    %v785 = vsel %vm784, 1, 0
    %v786 = vadd.s32 %v782, %v778
    %v787 = vadd.s32 %v783, %v785
    %v788 = vadd.s32 %v787, %v777
    %v789 = vadd.s32 %v788, %v779
    %v790 = vand.u32 %v767, 65535
    %v791 = vshrl.u32 %v767, 16
    %v792 = vand.u32 %v762, 65535
    %v793 = vshrl.u32 %v762, 16
    %v794 = vmul.u32 %v790, %v792
    %v795 = vmul.u32 %v790, %v793
    %v796 = vmul.u32 %v791, %v792
    %v797 = vmul.u32 %v791, %v793
    %v798 = vshll.u32 %v795, 16
    %v799 = vshrl.u32 %v795, 16
    %v800 = vshll.u32 %v796, 16
    %v801 = vshrl.u32 %v796, 16
    %vm802 = vc.u32 %v794, %v798
    %v803 = vsel %vm802, 1, 0
    %v804 = vadd.s32 %v794, %v798
    %v805 = vadd.s32 %v797, %v803
    %vm806 = vc.u32 %v804, %v800
    %v807 = vsel %vm806, 1, 0
    %v808 = vadd.s32 %v804, %v800
    %v809 = vadd.s32 %v805, %v807
    %v810 = vadd.s32 %v809, %v799
    %v811 = vadd.s32 %v810, %v801
    %v812 = vmul.u32 %v767, %v758
    %v813 = vadd.s32 %v789, %v808
    %vm814 = vc.u32 %v789, %v808
    %v815 = vadd.s32 %v811, 1
    %v816 = vsel %vm814, %v815, %v811
    %v817 = vadd.s32 %v812, %v816
    %v818 = vadd.s32 %v817, 536870912
    %v819 = vshrl.u32 %v818, 30
    %v820 = vshll.u32 %v819, 30
    %v821 = vsub.s32 %v817, %v820
    %vm822 = vcmp.lt.s32.totalorder %v821, 0
    %v823 = vsub.s32 0, %v821
    %v824 = vsel %vm822, %v823, %v821
    %v825 = vclz %v824
    %v826 = vsub.s32 %v825, 2
    %vm827 = vcmp.gt.s32.totalorder 0, %v826
    %v828 = vsel %vm827, 0, %v826
    %v829 = vsub.s32 32, %v828
    %v830 = vshll.u32 %v821, %v828
    %v831 = vshrl.u32 %v813, %v829
    %v832 = vor.u32 %v830, %v831
    %v833 = vsub.s32 4294967266, %v828
    %v834 = vadd.s32 %v833, 127
    %v835 = vshll.u32 %v834, 23
    %v836 = vor.u32 4788187, %v835
    %v837 = vand.u32 2147483647, %v836
    %v839 = vcvt.s32.f32 %v832
    %v840 = vmul.f32 %v839, %v837
    %v841 = vxor.u32 %v840, 2147483648
    %v842 = vsel %vm721, %v841, %v840
    %v843 = vsub.s32 4, %v819
    %v844 = vsel %vm721, %v843, %v819
    %v845 = vsel %vm720, %v95, %v842
    %v846 = vsel %vm720, 0, %v844
    %v847 = vmul.f32 %v845, %v845
    %v848 = vmul.f32 %v847, -0.001358992
    %v849 = vadd.f32 %v848, 0.041655596
    %v850 = vmul.f32 %v847, %v849
    %v851 = vadd.f32 %v850, -0.4999988
    %v852 = vmul.f32 %v847, %v851
    %v853 = vadd.f32 1.0, %v852
    %v854 = vmul.f32 %v845, %v845
    %v855 = vmul.f32 %v854, -0.00019511016
    %v856 = vadd.f32 %v855, 0.008332121
    %v857 = vmul.f32 %v854, %v856
    %v858 = vadd.f32 %v857, -0.16666654
    %v859 = vmul.f32 %v854, %v858
    %v860 = vadd.f32 %v859, 1.0
    %v861 = vmul.f32 %v860, %v845
    %vm862 = vweird.f32 %v95
    %v863 = vadd.s32 %v846, 3
    %v864 = vand.u32 %v863, 3
    %vm865 = vcmp.lt.s32.totalorder %v864, 2
    %vm866 = vcmp.eq.s32.totalorder %v864, 0
    %v867 = vxor.u32 %v861, 2147483648
    %v868 = vsel %vm866, %v853, %v867
    %vm869 = vcmp.eq.s32.totalorder %v864, 2
    %v870 = vxor.u32 %v853, 2147483648
    %v871 = vsel %vm869, %v870, %v861
    %v872 = vsel %vm865, %v868, %v871
    %v873 = vsel %vm862, nan, %v872
    %v874 = vand.u32 2147483647, %v96
    %vm875 = vcmp.le.f32.partialorder %v874, 0.7853982
    %vm876 = vcmp.lt.s32.totalorder %v96, 0
    %v877 = vand.u32 %v96, 2139095040
    %v878 = vshrl.u32 %v877, 23
    %v879 = vsub.s32 %v878, 127
    %v880 = vand.u32 2147483647, %v96
    %v881 = vand.u32 %v880, 8388607
    %v882 = vor.u32 %v881, 8388608
    %v883 = vsub.s32 0, %v882
    %v884 = vadd.s32 %v879, 1
    %vm885 = vcmp.gt.s32.totalorder %v884, 0
    %v886 = vsel %vm885, %v884, 0
    %v887 = vshrl.u32 %v886, 5
    %v888 = vand.u32 %v886, 31
    %v889 = vsub.s32 32, %v888
    %v890 = vshrl.u32 683565275, %v889
    %v891 = vshll.u32 683565275, %v888
    %v892 = vshrl.u32 2475754826, %v889
    %v893 = vor.u32 %v891, %v892
    %v894 = vshll.u32 2475754826, %v888
    %v895 = vshrl.u32 2131351028, %v889
    %v896 = vor.u32 %v894, %v895
    %v897 = vshll.u32 2131351028, %v888
    %v898 = vshrl.u32 2102212464, %v889
    %v899 = vor.u32 %v897, %v898
    %v900 = vshll.u32 2102212464, %v888
    %v901 = vshrl.u32 920167782, %v889
    %v902 = vor.u32 %v900, %v901
    %v903 = vshll.u32 920167782, %v888
    %v904 = vshrl.u32 1326507024, %v889
    %v905 = vor.u32 %v903, %v904
    %vm906 = vcmp.lt.s32.totalorder %v887, 1
    %vm907 = vcmp.lt.s32.totalorder %v887, 2
    %vm908 = vcmp.lt.s32.totalorder %v887, 3
    %vm909 = vcmp.lt.s32.totalorder %v887, 4
    %v910 = vsel %vm906, %v890, %v893
    %v911 = vsel %vm909, %v899, 2102212464
    %v912 = vsel %vm908, %v896, %v911
    %v913 = vsel %vm907, %v910, %v912
    %v914 = vsel %vm906, %v893, %v896
    %v915 = vsel %vm909, %v902, 920167782
    %v916 = vsel %vm908, %v899, %v915
    %v917 = vsel %vm907, %v914, %v916
    %v918 = vsel %vm906, %v896, %v899
    %v919 = vsel %vm909, %v905, 1326507024
    %v920 = vsel %vm908, %v902, %v919
    %v921 = vsel %vm907, %v918, %v920
    %v922 = vshll.u32 %v882, 8
    %v923 = vand.u32 %v922, 65535
    %v924 = vshrl.u32 %v922, 16
    %v925 = vand.u32 %v921, 65535
    %v926 = vshrl.u32 %v921, 16
    %v927 = vmul.u32 %v923, %v925
    %v928 = vmul.u32 %v923, %v926
    %v929 = vmul.u32 %v924, %v925
    %v930 = vmul.u32 %v924, %v926
    %v931 = vshll.u32 %v928, 16
    %v932 = vshrl.u32 %v928, 16
    %v933 = vshll.u32 %v929, 16
    %v934 = vshrl.u32 %v929, 16
    %vm935 = vc.u32 %v927, %v931
    %v936 = vsel %vm935, 1, 0
    %v937 = vadd.s32 %v927, %v931
    %v938 = vadd.s32 %v930, %v936
    %vm939 = vc.u32 %v937, %v933
    %v940 = vsel %vm939, 1, 0
    %v941 = vadd.s32 %v937, %v933
    %v942 = vadd.s32 %v938, %v940
    %v943 = vadd.s32 %v942, %v932
    %v944 = vadd.s32 %v943, %v934
    %v945 = vand.u32 %v922, 65535
    %v946 = vshrl.u32 %v922, 16
    %v947 = vand.u32 %v917, 65535
    %v948 = vshrl.u32 %v917, 16
    %v949 = vmul.u32 %v945, %v947
    %v950 = vmul.u32 %v945, %v948
    %v951 = vmul.u32 %v946, %v947
    %v952 = vmul.u32 %v946, %v948
    %v953 = vshll.u32 %v950, 16
    %v954 = vshrl.u32 %v950, 16
    %v955 = vshll.u32 %v951, 16
    %v956 = vshrl.u32 %v951, 16
    %vm957 = vc.u32 %v949, %v953
    %v958 = vsel %vm957, 1, 0
    %v959 = vadd.s32 %v949, %v953
    %v960 = vadd.s32 %v952, %v958
    %vm961 = vc.u32 %v959, %v955
    %v962 = vsel %vm961, 1, 0
    %v963 = vadd.s32 %v959, %v955
    %v964 = vadd.s32 %v960, %v962
    %v965 = vadd.s32 %v964, %v954
    %v966 = vadd.s32 %v965, %v956
    %v967 = vmul.u32 %v922, %v913
    %v968 = vadd.s32 %v944, %v963
    %vm969 = vc.u32 %v944, %v963
    %v970 = vadd.s32 %v966, 1
    %v971 = vsel %vm969, %v970, %v966
    %v972 = vadd.s32 %v967, %v971
    %v973 = vadd.s32 %v972, 536870912
    %v974 = vshrl.u32 %v973, 30
    %v975 = vshll.u32 %v974, 30
    %v976 = vsub.s32 %v972, %v975
    %vm977 = vcmp.lt.s32.totalorder %v976, 0
    %v978 = vsub.s32 0, %v976
    %v979 = vsel %vm977, %v978, %v976
    %v980 = vclz %v979
    %v981 = vsub.s32 %v980, 2
    %vm982 = vcmp.gt.s32.totalorder 0, %v981
    %v983 = vsel %vm982, 0, %v981
    %v984 = vsub.s32 32, %v983
    %v985 = vshll.u32 %v976, %v983
    %v986 = vshrl.u32 %v968, %v984
    %v987 = vor.u32 %v985, %v986
    %v988 = vsub.s32 4294967266, %v983
    %v989 = vadd.s32 %v988, 127
    %v990 = vshll.u32 %v989, 23
    %v991 = vor.u32 4788187, %v990
    %v992 = vand.u32 2147483647, %v991
    %v994 = vcvt.s32.f32 %v987
    %v995 = vmul.f32 %v994, %v992
    %v996 = vxor.u32 %v995, 2147483648
    %v997 = vsel %vm876, %v996, %v995
    %v998 = vsub.s32 4, %v974
    %v999 = vsel %vm876, %v998, %v974
    %v1000 = vsel %vm875, %v96, %v997
    %v1001 = vsel %vm875, 0, %v999
    %v1002 = vmul.f32 %v1000, %v1000
    %v1003 = vmul.f32 %v1002, -0.001358992
    %v1004 = vadd.f32 %v1003, 0.041655596
    %v1005 = vmul.f32 %v1002, %v1004
    %v1006 = vadd.f32 %v1005, -0.4999988
    %v1007 = vmul.f32 %v1002, %v1006
    %v1008 = vadd.f32 1.0, %v1007
    %v1009 = vmul.f32 %v1000, %v1000
    %v1010 = vmul.f32 %v1009, -0.00019511016
    %v1011 = vadd.f32 %v1010, 0.008332121
    %v1012 = vmul.f32 %v1009, %v1011
    %v1013 = vadd.f32 %v1012, -0.16666654
    %v1014 = vmul.f32 %v1009, %v1013
    %v1015 = vadd.f32 %v1014, 1.0
    %v1016 = vmul.f32 %v1015, %v1000
    %vm1017 = vweird.f32 %v96
    %v1018 = vadd.s32 %v1001, 3
    %v1019 = vand.u32 %v1018, 3
    %vm1020 = vcmp.lt.s32.totalorder %v1019, 2
    %vm1021 = vcmp.eq.s32.totalorder %v1019, 0
    %v1022 = vxor.u32 %v1016, 2147483648
    %v1023 = vsel %vm1021, %v1008, %v1022
    %vm1024 = vcmp.eq.s32.totalorder %v1019, 2
    %v1025 = vxor.u32 %v1008, 2147483648
    %v1026 = vsel %vm1024, %v1025, %v1016
    %v1027 = vsel %vm1020, %v1023, %v1026
    %v1028 = vsel %vm1017, nan, %v1027
    %v1029 = vand.u32 2147483647, %v97
    %vm1030 = vcmp.le.f32.partialorder %v1029, 0.7853982
    %vm1031 = vcmp.lt.s32.totalorder %v97, 0
    %v1032 = vand.u32 %v97, 2139095040
    %v1033 = vshrl.u32 %v1032, 23
    %v1034 = vsub.s32 %v1033, 127
    %v1035 = vand.u32 2147483647, %v97
    %v1036 = vand.u32 %v1035, 8388607
    %v1037 = vor.u32 %v1036, 8388608
    %v1038 = vsub.s32 0, %v1037
    %v1039 = vadd.s32 %v1034, 1
    %vm1040 = vcmp.gt.s32.totalorder %v1039, 0
    %v1041 = vsel %vm1040, %v1039, 0
    %v1042 = vshrl.u32 %v1041, 5
    %v1043 = vand.u32 %v1041, 31
    %v1044 = vsub.s32 32, %v1043
    %v1045 = vshrl.u32 683565275, %v1044
    %v1046 = vshll.u32 683565275, %v1043
    %v1047 = vshrl.u32 2475754826, %v1044
    %v1048 = vor.u32 %v1046, %v1047
    %v1049 = vshll.u32 2475754826, %v1043
    %v1050 = vshrl.u32 2131351028, %v1044
    %v1051 = vor.u32 %v1049, %v1050
    %v1052 = vshll.u32 2131351028, %v1043
    %v1053 = vshrl.u32 2102212464, %v1044
    %v1054 = vor.u32 %v1052, %v1053
    %v1055 = vshll.u32 2102212464, %v1043
    %v1056 = vshrl.u32 920167782, %v1044
    %v1057 = vor.u32 %v1055, %v1056
    %v1058 = vshll.u32 920167782, %v1043
    %v1059 = vshrl.u32 1326507024, %v1044
    %v1060 = vor.u32 %v1058, %v1059
    %vm1061 = vcmp.lt.s32.totalorder %v1042, 1
    %vm1062 = vcmp.lt.s32.totalorder %v1042, 2
    %vm1063 = vcmp.lt.s32.totalorder %v1042, 3
    %vm1064 = vcmp.lt.s32.totalorder %v1042, 4
    %v1065 = vsel %vm1061, %v1045, %v1048
    %v1066 = vsel %vm1064, %v1054, 2102212464
    %v1067 = vsel %vm1063, %v1051, %v1066
    %v1068 = vsel %vm1062, %v1065, %v1067
    %v1069 = vsel %vm1061, %v1048, %v1051
    %v1070 = vsel %vm1064, %v1057, 920167782
    %v1071 = vsel %vm1063, %v1054, %v1070
    %v1072 = vsel %vm1062, %v1069, %v1071
    %v1073 = vsel %vm1061, %v1051, %v1054
    %v1074 = vsel %vm1064, %v1060, 1326507024
    %v1075 = vsel %vm1063, %v1057, %v1074
    %v1076 = vsel %vm1062, %v1073, %v1075
    %v1077 = vshll.u32 %v1037, 8
    %v1078 = vand.u32 %v1077, 65535
    %v1079 = vshrl.u32 %v1077, 16
    %v1080 = vand.u32 %v1076, 65535
    %v1081 = vshrl.u32 %v1076, 16
    %v1082 = vmul.u32 %v1078, %v1080
    %v1083 = vmul.u32 %v1078, %v1081
    %v1084 = vmul.u32 %v1079, %v1080
    %v1085 = vmul.u32 %v1079, %v1081
    %v1086 = vshll.u32 %v1083, 16
    %v1087 = vshrl.u32 %v1083, 16
    %v1088 = vshll.u32 %v1084, 16
    %v1089 = vshrl.u32 %v1084, 16
    %vm1090 = vc.u32 %v1082, %v1086
    %v1091 = vsel %vm1090, 1, 0
    %v1092 = vadd.s32 %v1082, %v1086
    %v1093 = vadd.s32 %v1085, %v1091
    %vm1094 = vc.u32 %v1092, %v1088
    %v1095 = vsel %vm1094, 1, 0
    %v1096 = vadd.s32 %v1092, %v1088
    %v1097 = vadd.s32 %v1093, %v1095
    %v1098 = vadd.s32 %v1097, %v1087
    %v1099 = vadd.s32 %v1098, %v1089
    %v1100 = vand.u32 %v1077, 65535
    %v1101 = vshrl.u32 %v1077, 16
    %v1102 = vand.u32 %v1072, 65535
    %v1103 = vshrl.u32 %v1072, 16
    %v1104 = vmul.u32 %v1100, %v1102
    %v1105 = vmul.u32 %v1100, %v1103
    %v1106 = vmul.u32 %v1101, %v1102
    %v1107 = vmul.u32 %v1101, %v1103
    %v1108 = vshll.u32 %v1105, 16
    %v1109 = vshrl.u32 %v1105, 16
    %v1110 = vshll.u32 %v1106, 16
    %v1111 = vshrl.u32 %v1106, 16
    %vm1112 = vc.u32 %v1104, %v1108
    %v1113 = vsel %vm1112, 1, 0
    %v1114 = vadd.s32 %v1104, %v1108
    %v1115 = vadd.s32 %v1107, %v1113
    %vm1116 = vc.u32 %v1114, %v1110
    %v1117 = vsel %vm1116, 1, 0
    %v1118 = vadd.s32 %v1114, %v1110
    %v1119 = vadd.s32 %v1115, %v1117
    %v1120 = vadd.s32 %v1119, %v1109
    %v1121 = vadd.s32 %v1120, %v1111
    %v1122 = vmul.u32 %v1077, %v1068
    %v1123 = vadd.s32 %v1099, %v1118
    %vm1124 = vc.u32 %v1099, %v1118
    %v1125 = vadd.s32 %v1121, 1
    %v1126 = vsel %vm1124, %v1125, %v1121
    %v1127 = vadd.s32 %v1122, %v1126
    %v1128 = vadd.s32 %v1127, 536870912
    %v1129 = vshrl.u32 %v1128, 30
    %v1130 = vshll.u32 %v1129, 30
    %v1131 = vsub.s32 %v1127, %v1130
    %vm1132 = vcmp.lt.s32.totalorder %v1131, 0
    %v1133 = vsub.s32 0, %v1131
    %v1134 = vsel %vm1132, %v1133, %v1131
    %v1135 = vclz %v1134
    %v1136 = vsub.s32 %v1135, 2
    %vm1137 = vcmp.gt.s32.totalorder 0, %v1136
    %v1138 = vsel %vm1137, 0, %v1136
    %v1139 = vsub.s32 32, %v1138
    %v1140 = vshll.u32 %v1131, %v1138
    %v1141 = vshrl.u32 %v1123, %v1139
    %v1142 = vor.u32 %v1140, %v1141
    %v1143 = vsub.s32 4294967266, %v1138
    %v1144 = vadd.s32 %v1143, 127
    %v1145 = vshll.u32 %v1144, 23
    %v1146 = vor.u32 4788187, %v1145
    %v1147 = vand.u32 2147483647, %v1146
    %v1149 = vcvt.s32.f32 %v1142
    %v1150 = vmul.f32 %v1149, %v1147
    %v1151 = vxor.u32 %v1150, 2147483648
    %v1152 = vsel %vm1031, %v1151, %v1150
    %v1153 = vsub.s32 4, %v1129
    %v1154 = vsel %vm1031, %v1153, %v1129
    %v1155 = vsel %vm1030, %v97, %v1152
    %v1156 = vsel %vm1030, 0, %v1154
    %v1157 = vmul.f32 %v1155, %v1155
    %v1158 = vmul.f32 %v1157, -0.001358992
    %v1159 = vadd.f32 %v1158, 0.041655596
    %v1160 = vmul.f32 %v1157, %v1159
    %v1161 = vadd.f32 %v1160, -0.4999988
    %v1162 = vmul.f32 %v1157, %v1161
    %v1163 = vadd.f32 1.0, %v1162
    %v1164 = vmul.f32 %v1155, %v1155
    %v1165 = vmul.f32 %v1164, -0.00019511016
    %v1166 = vadd.f32 %v1165, 0.008332121
    %v1167 = vmul.f32 %v1164, %v1166
    %v1168 = vadd.f32 %v1167, -0.16666654
    %v1169 = vmul.f32 %v1164, %v1168
    %v1170 = vadd.f32 %v1169, 1.0
    %v1171 = vmul.f32 %v1170, %v1155
    %vm1172 = vweird.f32 %v97
    %v1173 = vadd.s32 %v1156, 3
    %v1174 = vand.u32 %v1173, 3
    %vm1175 = vcmp.lt.s32.totalorder %v1174, 2
    %vm1176 = vcmp.eq.s32.totalorder %v1174, 0
    %v1177 = vxor.u32 %v1171, 2147483648
    %v1178 = vsel %vm1176, %v1163, %v1177
    %vm1179 = vcmp.eq.s32.totalorder %v1174, 2
    %v1180 = vxor.u32 %v1163, 2147483648
    %v1181 = vsel %vm1179, %v1180, %v1171
    %v1182 = vsel %vm1175, %v1178, %v1181
    %v1183 = vsel %vm1172, nan, %v1182
    %v1184 = vand.u32 2147483647, %v98
    %vm1185 = vcmp.le.f32.partialorder %v1184, 0.7853982
    %vm1186 = vcmp.lt.s32.totalorder %v98, 0
    %v1187 = vand.u32 %v98, 2139095040
    %v1188 = vshrl.u32 %v1187, 23
    %v1189 = vsub.s32 %v1188, 127
    %v1190 = vand.u32 2147483647, %v98
    %v1191 = vand.u32 %v1190, 8388607
    %v1192 = vor.u32 %v1191, 8388608
    %v1193 = vsub.s32 0, %v1192
    %v1194 = vadd.s32 %v1189, 1
    %vm1195 = vcmp.gt.s32.totalorder %v1194, 0
    %v1196 = vsel %vm1195, %v1194, 0
    %v1197 = vshrl.u32 %v1196, 5
    %v1198 = vand.u32 %v1196, 31
    %v1199 = vsub.s32 32, %v1198
    %v1200 = vshrl.u32 683565275, %v1199
    %v1201 = vshll.u32 683565275, %v1198
    %v1202 = vshrl.u32 2475754826, %v1199
    %v1203 = vor.u32 %v1201, %v1202
    %v1204 = vshll.u32 2475754826, %v1198
    %v1205 = vshrl.u32 2131351028, %v1199
    %v1206 = vor.u32 %v1204, %v1205
    %v1207 = vshll.u32 2131351028, %v1198
    %v1208 = vshrl.u32 2102212464, %v1199
    %v1209 = vor.u32 %v1207, %v1208
    %v1210 = vshll.u32 2102212464, %v1198
    %v1211 = vshrl.u32 920167782, %v1199
    %v1212 = vor.u32 %v1210, %v1211
    %v1213 = vshll.u32 920167782, %v1198
    %v1214 = vshrl.u32 1326507024, %v1199
    %v1215 = vor.u32 %v1213, %v1214
    %vm1216 = vcmp.lt.s32.totalorder %v1197, 1
    %vm1217 = vcmp.lt.s32.totalorder %v1197, 2
    %vm1218 = vcmp.lt.s32.totalorder %v1197, 3
    %vm1219 = vcmp.lt.s32.totalorder %v1197, 4
    %v1220 = vsel %vm1216, %v1200, %v1203
    %v1221 = vsel %vm1219, %v1209, 2102212464
    %v1222 = vsel %vm1218, %v1206, %v1221
    %v1223 = vsel %vm1217, %v1220, %v1222
    %v1224 = vsel %vm1216, %v1203, %v1206
    %v1225 = vsel %vm1219, %v1212, 920167782
    %v1226 = vsel %vm1218, %v1209, %v1225
    %v1227 = vsel %vm1217, %v1224, %v1226
    %v1228 = vsel %vm1216, %v1206, %v1209
    %v1229 = vsel %vm1219, %v1215, 1326507024
    %v1230 = vsel %vm1218, %v1212, %v1229
    %v1231 = vsel %vm1217, %v1228, %v1230
    %v1232 = vshll.u32 %v1192, 8
    %v1233 = vand.u32 %v1232, 65535
    %v1234 = vshrl.u32 %v1232, 16
    %v1235 = vand.u32 %v1231, 65535
    %v1236 = vshrl.u32 %v1231, 16
    %v1237 = vmul.u32 %v1233, %v1235
    %v1238 = vmul.u32 %v1233, %v1236
    %v1239 = vmul.u32 %v1234, %v1235
    %v1240 = vmul.u32 %v1234, %v1236
    %v1241 = vshll.u32 %v1238, 16
    %v1242 = vshrl.u32 %v1238, 16
    %v1243 = vshll.u32 %v1239, 16
    %v1244 = vshrl.u32 %v1239, 16
    %vm1245 = vc.u32 %v1237, %v1241
    %v1246 = vsel %vm1245, 1, 0
    %v1247 = vadd.s32 %v1237, %v1241
    %v1248 = vadd.s32 %v1240, %v1246
    %vm1249 = vc.u32 %v1247, %v1243
    %v1250 = vsel %vm1249, 1, 0
    %v1251 = vadd.s32 %v1247, %v1243
    %v1252 = vadd.s32 %v1248, %v1250
    %v1253 = vadd.s32 %v1252, %v1242
    %v1254 = vadd.s32 %v1253, %v1244
    %v1255 = vand.u32 %v1232, 65535
    %v1256 = vshrl.u32 %v1232, 16
    %v1257 = vand.u32 %v1227, 65535
    %v1258 = vshrl.u32 %v1227, 16
    %v1259 = vmul.u32 %v1255, %v1257
    %v1260 = vmul.u32 %v1255, %v1258
    %v1261 = vmul.u32 %v1256, %v1257
    %v1262 = vmul.u32 %v1256, %v1258
    %v1263 = vshll.u32 %v1260, 16
    %v1264 = vshrl.u32 %v1260, 16
    %v1265 = vshll.u32 %v1261, 16
    %v1266 = vshrl.u32 %v1261, 16
    %vm1267 = vc.u32 %v1259, %v1263
    %v1268 = vsel %vm1267, 1, 0
    %v1269 = vadd.s32 %v1259, %v1263
    %v1270 = vadd.s32 %v1262, %v1268
    %vm1271 = vc.u32 %v1269, %v1265
    %v1272 = vsel %vm1271, 1, 0
    %v1273 = vadd.s32 %v1269, %v1265
    %v1274 = vadd.s32 %v1270, %v1272
    %v1275 = vadd.s32 %v1274, %v1264
    %v1276 = vadd.s32 %v1275, %v1266
    %v1277 = vmul.u32 %v1232, %v1223
    %v1278 = vadd.s32 %v1254, %v1273
    %vm1279 = vc.u32 %v1254, %v1273
    %v1280 = vadd.s32 %v1276, 1
    %v1281 = vsel %vm1279, %v1280, %v1276
    %v1282 = vadd.s32 %v1277, %v1281
    %v1283 = vadd.s32 %v1282, 536870912
    %v1284 = vshrl.u32 %v1283, 30
    %v1285 = vshll.u32 %v1284, 30
    %v1286 = vsub.s32 %v1282, %v1285
    %vm1287 = vcmp.lt.s32.totalorder %v1286, 0
    %v1288 = vsub.s32 0, %v1286
    %v1289 = vsel %vm1287, %v1288, %v1286
    %v1290 = vclz %v1289
    %v1291 = vsub.s32 %v1290, 2
    %vm1292 = vcmp.gt.s32.totalorder 0, %v1291
    %v1293 = vsel %vm1292, 0, %v1291
    %v1294 = vsub.s32 32, %v1293
    %v1295 = vshll.u32 %v1286, %v1293
    %v1296 = vshrl.u32 %v1278, %v1294
    %v1297 = vor.u32 %v1295, %v1296
    %v1298 = vsub.s32 4294967266, %v1293
    %v1299 = vadd.s32 %v1298, 127
    %v1300 = vshll.u32 %v1299, 23
    %v1301 = vor.u32 4788187, %v1300
    %v1302 = vand.u32 2147483647, %v1301
    %v1304 = vcvt.s32.f32 %v1297
    %v1305 = vmul.f32 %v1304, %v1302
    %v1306 = vxor.u32 %v1305, 2147483648
    %v1307 = vsel %vm1186, %v1306, %v1305
    %v1308 = vsub.s32 4, %v1284
    %v1309 = vsel %vm1186, %v1308, %v1284
    %v1310 = vsel %vm1185, %v98, %v1307
    %v1311 = vsel %vm1185, 0, %v1309
    %v1312 = vmul.f32 %v1310, %v1310
    %v1313 = vmul.f32 %v1312, -0.001358992
    %v1314 = vadd.f32 %v1313, 0.041655596
    %v1315 = vmul.f32 %v1312, %v1314
    %v1316 = vadd.f32 %v1315, -0.4999988
    %v1317 = vmul.f32 %v1312, %v1316
    %v1318 = vadd.f32 1.0, %v1317
    %v1319 = vmul.f32 %v1310, %v1310
    %v1320 = vmul.f32 %v1319, -0.00019511016
    %v1321 = vadd.f32 %v1320, 0.008332121
    %v1322 = vmul.f32 %v1319, %v1321
    %v1323 = vadd.f32 %v1322, -0.16666654
    %v1324 = vmul.f32 %v1319, %v1323
    %v1325 = vadd.f32 %v1324, 1.0
    %v1326 = vmul.f32 %v1325, %v1310
    %vm1327 = vweird.f32 %v98
    %v1328 = vadd.s32 %v1311, 3
    %v1329 = vand.u32 %v1328, 3
    %vm1330 = vcmp.lt.s32.totalorder %v1329, 2
    %vm1331 = vcmp.eq.s32.totalorder %v1329, 0
    %v1332 = vxor.u32 %v1326, 2147483648
    %v1333 = vsel %vm1331, %v1318, %v1332
    %vm1334 = vcmp.eq.s32.totalorder %v1329, 2
    %v1335 = vxor.u32 %v1318, 2147483648
    %v1336 = vsel %vm1334, %v1335, %v1326
    %v1337 = vsel %vm1330, %v1333, %v1336
    %v1338 = vsel %vm1327, nan, %v1337
    %1339 = vst [vmem:[#allocation7] sm:$0xff] %v253
    %1340 = vst [vmem:[#allocation7 + $0x8] sm:$0xff] %v408
    %1341 = vst [vmem:[#allocation7 + $0x10] sm:$0xff] %v563
    %1342 = vst [vmem:[#allocation7 + $0x18] sm:$0xff] %v718
    %1343 = vst [vmem:[#allocation7 + $0x20] sm:$0xff] %v873
    %1344 = vst [vmem:[#allocation7 + $0x28] sm:$0xff] %v1028
    %1345 = vst [vmem:[#allocation7 + $0x30] sm:$0xff] %v1183
    %1346 = vst [vmem:[#allocation7 + $0x38] sm:$0xff] %v1338
    // Predicated region
    $region18: #{tpu_custom_call.1} parent=1 // pred_check
      _
    $region19: #{tpu_custom_call.1} parent=1 // pred_check_branch
      %1348 = sbr.rel (0) target = $region21
    $region20: #{tpu_custom_call.1} parent=1 // pred_region
      %1350 = vsyncadd [#allocation4], 0
      %s1351 = sshll.u32 [#allocation7], 4
      %s1352 = int_to_ptr.vmem [resolvable:$true] %s1351
      %s1353 = sshll.u32 %s2, 4
      %s1354 = int_to_ptr.hbm [resolvable:$true] %s1353
      %1359 = dma.vmem_to_hbm [thread:$0]  %s1352, 1024, %s1354, [#allocation4], 128, 128, 8
    $region21: #{tpu_custom_call.1} parent=1 // pred_fallthru
      _
    // Predicated region
    $region22: #{tpu_custom_call.1} parent=1 // pred_check
      _
    $region23: #{tpu_custom_call.1} parent=1 // pred_check_branch
      %1361 = sbr.rel (0) target = $region25
    $region24: #{tpu_custom_call.1} parent=1 // pred_region
      %1363 = dma.done [#allocation4], 1024
    $region25: #{tpu_custom_call.1} parent=1 // pred_fallthru
      _
    %1364 = vsyncpa [#allocation3], 1
    %1365 = vsyncpa [#allocation6], 1
    %1366 = vsyncpa [#allocation4], 1

</llo_original>
